<compile_context>
chip_gen: v5e
topology: v5e:2x2
jax: 0.10.0
libtpu: 0.0.40
codegen_flags: <defaults>
</compile_context>

<pallas_src>
import jax
import jax.numpy as jnp
import numpy as np
from jax import lax
from jax.experimental import pallas as pl
from jax.experimental.pallas import tpu as pltpu


def conv_down_kernel(xp_ref, xh_ref, w1_ref, b1_ref, w2_ref, w3_ref, b3_ref,
                     out_ref):
    S, _ = xp_ref.shape              # S = tH * Wo (tile rows, flattened)
    C = w1_ref.shape[1]
    Wo = xh_ref.shape[0] // 2
    tH = S // Wo

    j = pl.program_id(1)
    nj = pl.num_programs(1)

    # --- Conv2d(C,C,2,2,0) + bias: one im2col matmul over
    #     [halo_above | tile rows | halo_below]  (MXU) ---
    xh = xh_ref[...]                                           # (2*Wo, 4C)
    xall = jnp.concatenate([xh[:Wo], xp_ref[...], xh[Wo:]], axis=0)
    y1 = jnp.dot(xall, w1_ref[...],
                 preferred_element_type=jnp.float32) + b1_ref[...]

    # --- LeakyReLU (PyTorch default negative_slope = 0.01) ---
    y1 = jnp.where(y1 >= 0.0, y1, 0.01 * y1)

    # --- zero halo rows that fall outside the image
    #     (== the depthwise conv's zero padding along H) ---
    r = lax.broadcasted_iota(jnp.int32, y1.shape, 0)
    oob = ((r < Wo) & (j == 0)) | ((r >= (tH + 1) * Wo) & (j == nj - 1))
    y1 = jnp.where(oob, 0.0, y1)

    # --- depthwise Conv2d(C,C,3,1,1,groups=C): per-tile value, 9 shifted
    #     windows of a once-padded array (no VMEM scratch, no full zero-fill;
    #     shifts are vreg sublane shuffles on the otherwise-idle XLU) ---
    y1r = y1.reshape(tH + 2, Wo, C)
    zc = jnp.zeros((tH + 2, 1, C), jnp.float32)
    y1p = jnp.concatenate([zc, y1r, zc], axis=1)               # (tH+2, Wo+2, C)
    w2 = w2_ref[...]                                           # (9, C)
    acc = jnp.zeros((tH, Wo, C), jnp.float32)
    for dy in range(3):
        for dx in range(3):
            acc = acc + (y1p[dy:dy + tH, dx:dx + Wo, :]
                         * w2[dy * 3 + dx].reshape(1, 1, C))

    # --- Conv2d(C,2C,1,1,0) + bias: pointwise matmul, lane-contiguous store ---
    y3 = jnp.dot(acc.reshape(S, C), w3_ref[...],
                 preferred_element_type=jnp.float32)
    out_ref[...] = y3 + b3_ref[...]


def _pick_tile_rows(Ho, Wo, C, budget_bytes=2 << 20):
    """Largest row-tile that (a) divides Ho, (b) keeps the block's
    second-to-last dim (tH*Wo) a multiple of the 8-sublane granule, and
    (c) keeps the double-buffered per-tile footprint modest (sized for
    v7x's 64 MiB physical / 32 MiB default-scoped VMEM)."""
    best = None
    for t in range(1, Ho + 1):
        if Ho % t:
            continue
        if (t * Wo) % 8 != 0 and t != Ho:
            continue
        per_tile = (t * Wo * 4 * C          # xp block
                    + 2 * Wo * 4 * C        # halo block
                    + t * Wo * 2 * C        # out block
                    + (t + 2) * (Wo + 2) * C) * 4 * 2   # values, f32, 2x buf
        if per_tile <= budget_bytes:
            best = t
    return best if best is not None else Ho


def conv_down(x_nchw, w1, b1, w2, w3, b3, *, tile_rows=None):
    """ConvDown(dsconv=True) forward.

    x_nchw: [B, C, H, W] float32 (NCHW, like PyTorch).
    Weights in PyTorch layout:
      w1: [C, C, 2, 2]   b1: [C]        (2x2 stride-2 conv)
      w2: [C, 1, 3, 3]                  (depthwise 3x3, no bias)
      w3: [2C, C, 1, 1]  b3: [2C]       (1x1 conv)
    Returns [B, 2C, H//2, W//2] (NCHW).
    """
    B, C, H, W = x_nchw.shape
    assert H % 2 == 0 and W % 2 == 0
    Ho, Wo = H // 2, W // 2

    tH = tile_rows if tile_rows is not None else _pick_tile_rows(Ho, Wo, C)
    assert Ho % tH == 0, "tile_rows must divide H//2"
    assert (tH * Wo) % 8 == 0 or tH == Ho, "tile must cover whole sublanes"
    nj = Ho // tH

    # NCHW -> NHWC -> space-to-depth im2col for the 2x2/s2 conv.
    # Patch index k = ky*2C + kx*C + ci.
    x = jnp.transpose(x_nchw, (0, 2, 3, 1))                        # [B,H,W,C]
    xp = x.reshape(B, Ho, 2, Wo, 2, C).transpose(0, 1, 3, 2, 4, 5)
    xp = xp.reshape(B, Ho, Wo, 4 * C)

    # One im2col row above / below every row tile (depthwise-3x3 halo).
    # Out-of-image halos are zero-filled here and masked inside the kernel.
    zrow = jnp.zeros((B, 1, Wo, 4 * C), xp.dtype)
    above = jnp.concatenate([zrow, xp[:, tH - 1:Ho - 1:tH]], axis=1)
    below = jnp.concatenate([xp[:, tH::tH], zrow], axis=1)
    xh = jnp.stack([above, below], axis=2).reshape(B, nj, 2 * Wo, 4 * C)

    xp2 = xp.reshape(B, Ho * Wo, 4 * C)

    # Weights repacked into matmul / tap-major layouts.
    w1m = jnp.transpose(w1, (2, 3, 1, 0)).reshape(4 * C, C)        # [4C, C]
    b1m = b1.reshape(1, C)
    w2m = jnp.transpose(w2[:, 0, :, :], (1, 2, 0)).reshape(9, C)   # [9, C]
    w3m = jnp.transpose(w3[:, :, 0, 0], (1, 0))                    # [C, 2C]
    b3m = b3.reshape(1, 2 * C)

    out3 = pl.pallas_call(
        conv_down_kernel,
        out_shape=jax.ShapeDtypeStruct((B, Ho * Wo, 2 * C), jnp.float32),
        grid=(B, nj),
        in_specs=[
            pl.BlockSpec((None, tH * Wo, 4 * C), lambda b, j: (b, j, 0)),
            pl.BlockSpec((None, None, 2 * Wo, 4 * C),
                         lambda b, j: (b, j, 0, 0)),
            pl.BlockSpec((4 * C, C), lambda b, j: (0, 0)),
            pl.BlockSpec((1, C), lambda b, j: (0, 0)),
            pl.BlockSpec((9, C), lambda b, j: (0, 0)),
            pl.BlockSpec((C, 2 * C), lambda b, j: (0, 0)),
            pl.BlockSpec((1, 2 * C), lambda b, j: (0, 0)),
        ],
        out_specs=pl.BlockSpec((None, tH * Wo, 2 * C), lambda b, j: (b, j, 0)),
        compiler_params=pltpu.CompilerParams(
            dimension_semantics=("parallel", "parallel")),
    )(xp2, xh, w1m, b1m, w2m, w3m, b3m)

    # [B, Ho*Wo, 2C] -> NCHW to match the PyTorch module.
    return jnp.transpose(out3.reshape(B, Ho, Wo, 2 * C), (0, 3, 1, 2))


def conv_down_reference(x, w1, b1, w2, w3, b3):
    """Pure-JAX NCHW reference mirroring the PyTorch module exactly."""
    C = x.shape[1]
    dn = ('NCHW', 'OIHW', 'NCHW')
    y = lax.conv_general_dilated(x, w1, (2, 2), 'VALID', dimension_numbers=dn)
    y = y + b1[None, :, None, None]
    y = jnp.where(y >= 0.0, y, 0.01 * y)
    y = lax.conv_general_dilated(y, w2, (1, 1), [(1, 1), (1, 1)],
                                 dimension_numbers=dn, feature_group_count=C)
    y = lax.conv_general_dilated(y, w3, (1, 1), 'VALID', dimension_numbers=dn)
    y = y + b3[None, :, None, None]
    return y


if __name__ == "__main__":
    B, C, H, W = 2, 4, 16, 16
    key = jax.random.PRNGKey(0)
    kx, k1, kb1, k2, k3, kb3 = jax.random.split(key, 6)

    x = jax.random.normal(kx, (B, C, H, W), dtype=jnp.float32)
    # Deterministic synthetic parameters (shapes from ConvDown.__init__).
    w1 = 0.25 * jax.random.normal(k1, (C, C, 2, 2), dtype=jnp.float32)
    b1 = 0.10 * jax.random.normal(kb1, (C,), dtype=jnp.float32)
    w2 = 0.25 * jax.random.normal(k2, (C, 1, 3, 3), dtype=jnp.float32)
    w3 = 0.25 * jax.random.normal(k3, (2 * C, C, 1, 1), dtype=jnp.float32)
    b3 = 0.10 * jax.random.normal(kb3, (2 * C,), dtype=jnp.float32)

    ref = jax.block_until_ready(conv_down_reference(x, w1, b1, w2, w3, b3))

    # Multi-tile path: grid = (B, 4) row tiles -> exercises the halo logic.
    out = jax.block_until_ready(conv_down(x, w1, b1, w2, w3, b3, tile_rows=2))
    assert out.shape == (B, 2 * C, H // 2, W // 2), out.shape
    np.testing.assert_allclose(np.asarray(out), np.asarray(ref),
                               rtol=1e-4, atol=1e-4)

    # Auto-selected tile size (single row tile at this toy shape).
    out2 = jax.block_until_ready(conv_down(x, w1, b1, w2, w3, b3))
    np.testing.assert_allclose(np.asarray(out2), np.asarray(ref),
                               rtol=1e-4, atol=1e-4)

    print("KERNEL_OK")
</pallas_src>

<mosaic_0001>
module attributes {stable_mosaic.version = 11 : i64} {
  func.func @conv_down_kernel(%arg0: i32, %arg1: i32, %arg2: memref<1x16x16xf32, #tpu.memory_space<vmem>>, %arg3: memref<1x1x16x16xf32, #tpu.memory_space<vmem>>, %arg4: memref<16x4xf32, #tpu.memory_space<vmem>>, %arg5: memref<1x4xf32, #tpu.memory_space<vmem>>, %arg6: memref<9x4xf32, #tpu.memory_space<vmem>>, %arg7: memref<4x8xf32, #tpu.memory_space<vmem>>, %arg8: memref<1x8xf32, #tpu.memory_space<vmem>>, %arg9: memref<1x16x8xf32, #tpu.memory_space<vmem>>) attributes {dimension_semantics = [#tpu.dimension_semantics<parallel>, #tpu.dimension_semantics<parallel>], iteration_bounds = array<i64: 2, 4>, scalar_prefetch = 0 : i64, scratch_operands = 0 : i64, tpu.core_type = #tpu.core_type<tc>, window_params = [{transform_indices = @transform_0, window_bounds = array<i64: 1, 16, 16>}, {transform_indices = @transform_1, window_bounds = array<i64: 1, 1, 16, 16>}, {pipeline_mode = #tpu.pipeline_mode<synchronous>, transform_indices = @transform_2, window_bounds = array<i64: 16, 4>}, {pipeline_mode = #tpu.pipeline_mode<synchronous>, transform_indices = @transform_3, window_bounds = array<i64: 1, 4>}, {pipeline_mode = #tpu.pipeline_mode<synchronous>, transform_indices = @transform_4, window_bounds = array<i64: 9, 4>}, {pipeline_mode = #tpu.pipeline_mode<synchronous>, transform_indices = @transform_5, window_bounds = array<i64: 4, 8>}, {pipeline_mode = #tpu.pipeline_mode<synchronous>, transform_indices = @transform_6, window_bounds = array<i64: 1, 8>}, {transform_indices = @transform_7, window_bounds = array<i64: 1, 16, 8>}]} {
    %c0 = arith.constant 0 : index
    %c0_0 = arith.constant 0 : index
    %c0_1 = arith.constant 0 : index
    %c0_2 = arith.constant 0 : index
    %0 = vector.load %arg3[%c0, %c0_0, %c0_1, %c0_2] : memref<1x1x16x16xf32, #tpu.memory_space<vmem>>, vector<1x1x16x16xf32>
    %1 = vector.shape_cast %0 : vector<1x1x16x16xf32> to vector<16x16xf32>
    %2 = vector.extract_strided_slice %1 {offsets = [0, 0], sizes = [8, 16], strides = [1, 1]} : vector<16x16xf32> to vector<8x16xf32>
    %c0_3 = arith.constant 0 : index
    %c0_4 = arith.constant 0 : index
    %c0_5 = arith.constant 0 : index
    %3 = vector.load %arg2[%c0_3, %c0_4, %c0_5] : memref<1x16x16xf32, #tpu.memory_space<vmem>>, vector<1x16x16xf32>
    %4 = vector.shape_cast %3 : vector<1x16x16xf32> to vector<16x16xf32>
    %5 = vector.extract_strided_slice %1 {offsets = [8, 0], sizes = [8, 16], strides = [1, 1]} : vector<16x16xf32> to vector<8x16xf32>
    %6 = tpu.concatenate %2, %4, %5 in 0 : vector<8x16xf32>, vector<16x16xf32>, vector<8x16xf32> -> vector<32x16xf32>
    %c0_6 = arith.constant 0 : index
    %c0_7 = arith.constant 0 : index
    %7 = vector.load %arg4[%c0_6, %c0_7] : memref<16x4xf32, #tpu.memory_space<vmem>>, vector<16x4xf32>
    %cst = arith.constant dense<0.000000e+00> : vector<32x4xf32>
    %8 = tpu.matmul %6, %7, %cst {dimension_numbers = #tpu.dot_dimension_numbers<[1], [0], [0], [1], [0, 0, 1, 1], [], []>} : vector<32x16xf32>, vector<16x4xf32>, vector<32x4xf32> -> vector<32x4xf32>
    %c0_8 = arith.constant 0 : index
    %c0_9 = arith.constant 0 : index
    %9 = vector.load %arg5[%c0_8, %c0_9] : memref<1x4xf32, #tpu.memory_space<vmem>>, vector<1x4xf32>
    %10 = vector.broadcast %9 : vector<1x4xf32> to vector<32x4xf32>
    %11 = arith.addf %8, %10 : vector<32x4xf32>
    %cst_10 = arith.constant 0.000000e+00 : f32
    %12 = vector.broadcast %cst_10 : f32 to vector<32x4xf32>
    %13 = arith.cmpf oge, %11, %12 : vector<32x4xf32>
    %cst_11 = arith.constant 0.00999999977 : f32
    %14 = vector.broadcast %cst_11 : f32 to vector<32x4xf32>
    %15 = arith.mulf %14, %11 : vector<32x4xf32>
    %16 = arith.select %13, %11, %15 : vector<32x4xi1>, vector<32x4xf32>
    %17 = tpu.iota {dimensions = array<i32: 0>} : vector<32x4xi32>
    %c8_i32 = arith.constant 8 : i32
    %18 = vector.broadcast %c8_i32 : i32 to vector<32x4xi32>
    %19 = arith.cmpi slt, %17, %18 : vector<32x4xi32>
    %c0_i32 = arith.constant 0 : i32
    %20 = arith.cmpi eq, %arg1, %c0_i32 : i32
    %21 = vector.broadcast %20 : i1 to vector<32x4xi1>
    %22 = arith.andi %19, %21 : vector<32x4xi1>
    %c24_i32 = arith.constant 24 : i32
    %23 = vector.broadcast %c24_i32 : i32 to vector<32x4xi32>
    %24 = arith.cmpi sge, %17, %23 : vector<32x4xi32>
    %c3_i32 = arith.constant 3 : i32
    %25 = arith.cmpi eq, %arg1, %c3_i32 : i32
    %26 = vector.broadcast %25 : i1 to vector<32x4xi1>
    %27 = arith.andi %24, %26 : vector<32x4xi1>
    %28 = arith.ori %22, %27 : vector<32x4xi1>
    %cst_12 = arith.constant 0.000000e+00 : f32
    %29 = vector.broadcast %cst_12 : f32 to vector<32x4xf32>
    %30 = arith.select %28, %29, %16 : vector<32x4xi1>, vector<32x4xf32>
    %31 = vector.shape_cast %30 : vector<32x4xf32> to vector<4x8x4xf32>
    %cst_13 = arith.constant 0.000000e+00 : f32
    %32 = vector.broadcast %cst_13 : f32 to vector<4x1x4xf32>
    %33 = tpu.concatenate %32, %31, %32 in 1 : vector<4x1x4xf32>, vector<4x8x4xf32>, vector<4x1x4xf32> -> vector<4x10x4xf32>
    %c0_14 = arith.constant 0 : index
    %c0_15 = arith.constant 0 : index
    %34 = vector.load %arg6[%c0_14, %c0_15] : memref<9x4xf32, #tpu.memory_space<vmem>>, vector<9x4xf32>
    %cst_16 = arith.constant 0.000000e+00 : f32
    %35 = vector.broadcast %cst_16 : f32 to vector<2x8x4xf32>
    %36 = vector.extract_strided_slice %33 {offsets = [0, 0, 0], sizes = [2, 8, 4], strides = [1, 1, 1]} : vector<4x10x4xf32> to vector<2x8x4xf32>
    %37 = vector.extract_strided_slice %34 {offsets = [0, 0], sizes = [1, 4], strides = [1, 1]} : vector<9x4xf32> to vector<1x4xf32>
    %38 = vector.shape_cast %37 : vector<1x4xf32> to vector<4xf32>
    %39 = vector.shape_cast %38 : vector<4xf32> to vector<1x1x4xf32>
    %40 = vector.broadcast %39 : vector<1x1x4xf32> to vector<2x8x4xf32>
    %41 = arith.mulf %36, %40 : vector<2x8x4xf32>
    %42 = arith.addf %35, %41 : vector<2x8x4xf32>
    %43 = vector.extract_strided_slice %33 {offsets = [0, 1, 0], sizes = [2, 8, 4], strides = [1, 1, 1]} : vector<4x10x4xf32> to vector<2x8x4xf32>
    %44 = vector.extract_strided_slice %34 {offsets = [1, 0], sizes = [1, 4], strides = [1, 1]} : vector<9x4xf32> to vector<1x4xf32>
    %45 = vector.shape_cast %44 : vector<1x4xf32> to vector<4xf32>
    %46 = vector.shape_cast %45 : vector<4xf32> to vector<1x1x4xf32>
    %47 = vector.broadcast %46 : vector<1x1x4xf32> to vector<2x8x4xf32>
    %48 = arith.mulf %43, %47 : vector<2x8x4xf32>
    %49 = arith.addf %42, %48 : vector<2x8x4xf32>
    %50 = vector.extract_strided_slice %33 {offsets = [0, 2, 0], sizes = [2, 8, 4], strides = [1, 1, 1]} : vector<4x10x4xf32> to vector<2x8x4xf32>
    %51 = vector.extract_strided_slice %34 {offsets = [2, 0], sizes = [1, 4], strides = [1, 1]} : vector<9x4xf32> to vector<1x4xf32>
    %52 = vector.shape_cast %51 : vector<1x4xf32> to vector<4xf32>
    %53 = vector.shape_cast %52 : vector<4xf32> to vector<1x1x4xf32>
    %54 = vector.broadcast %53 : vector<1x1x4xf32> to vector<2x8x4xf32>
    %55 = arith.mulf %50, %54 : vector<2x8x4xf32>
    %56 = arith.addf %49, %55 : vector<2x8x4xf32>
    %57 = vector.extract_strided_slice %33 {offsets = [1, 0, 0], sizes = [2, 8, 4], strides = [1, 1, 1]} : vector<4x10x4xf32> to vector<2x8x4xf32>
    %58 = vector.extract_strided_slice %34 {offsets = [3, 0], sizes = [1, 4], strides = [1, 1]} : vector<9x4xf32> to vector<1x4xf32>
    %59 = vector.shape_cast %58 : vector<1x4xf32> to vector<4xf32>
    %60 = vector.shape_cast %59 : vector<4xf32> to vector<1x1x4xf32>
    %61 = vector.broadcast %60 : vector<1x1x4xf32> to vector<2x8x4xf32>
    %62 = arith.mulf %57, %61 : vector<2x8x4xf32>
    %63 = arith.addf %56, %62 : vector<2x8x4xf32>
    %64 = vector.extract_strided_slice %33 {offsets = [1, 1, 0], sizes = [2, 8, 4], strides = [1, 1, 1]} : vector<4x10x4xf32> to vector<2x8x4xf32>
    %65 = vector.extract_strided_slice %34 {offsets = [4, 0], sizes = [1, 4], strides = [1, 1]} : vector<9x4xf32> to vector<1x4xf32>
    %66 = vector.shape_cast %65 : vector<1x4xf32> to vector<4xf32>
    %67 = vector.shape_cast %66 : vector<4xf32> to vector<1x1x4xf32>
    %68 = vector.broadcast %67 : vector<1x1x4xf32> to vector<2x8x4xf32>
    %69 = arith.mulf %64, %68 : vector<2x8x4xf32>
    %70 = arith.addf %63, %69 : vector<2x8x4xf32>
    %71 = vector.extract_strided_slice %33 {offsets = [1, 2, 0], sizes = [2, 8, 4], strides = [1, 1, 1]} : vector<4x10x4xf32> to vector<2x8x4xf32>
    %72 = vector.extract_strided_slice %34 {offsets = [5, 0], sizes = [1, 4], strides = [1, 1]} : vector<9x4xf32> to vector<1x4xf32>
    %73 = vector.shape_cast %72 : vector<1x4xf32> to vector<4xf32>
    %74 = vector.shape_cast %73 : vector<4xf32> to vector<1x1x4xf32>
    %75 = vector.broadcast %74 : vector<1x1x4xf32> to vector<2x8x4xf32>
    %76 = arith.mulf %71, %75 : vector<2x8x4xf32>
    %77 = arith.addf %70, %76 : vector<2x8x4xf32>
    %78 = vector.extract_strided_slice %33 {offsets = [2, 0, 0], sizes = [2, 8, 4], strides = [1, 1, 1]} : vector<4x10x4xf32> to vector<2x8x4xf32>
    %79 = vector.extract_strided_slice %34 {offsets = [6, 0], sizes = [1, 4], strides = [1, 1]} : vector<9x4xf32> to vector<1x4xf32>
    %80 = vector.shape_cast %79 : vector<1x4xf32> to vector<4xf32>
    %81 = vector.shape_cast %80 : vector<4xf32> to vector<1x1x4xf32>
    %82 = vector.broadcast %81 : vector<1x1x4xf32> to vector<2x8x4xf32>
    %83 = arith.mulf %78, %82 : vector<2x8x4xf32>
    %84 = arith.addf %77, %83 : vector<2x8x4xf32>
    %85 = vector.extract_strided_slice %33 {offsets = [2, 1, 0], sizes = [2, 8, 4], strides = [1, 1, 1]} : vector<4x10x4xf32> to vector<2x8x4xf32>
    %86 = vector.extract_strided_slice %34 {offsets = [7, 0], sizes = [1, 4], strides = [1, 1]} : vector<9x4xf32> to vector<1x4xf32>
    %87 = vector.shape_cast %86 : vector<1x4xf32> to vector<4xf32>
    %88 = vector.shape_cast %87 : vector<4xf32> to vector<1x1x4xf32>
    %89 = vector.broadcast %88 : vector<1x1x4xf32> to vector<2x8x4xf32>
    %90 = arith.mulf %85, %89 : vector<2x8x4xf32>
    %91 = arith.addf %84, %90 : vector<2x8x4xf32>
    %92 = vector.extract_strided_slice %33 {offsets = [2, 2, 0], sizes = [2, 8, 4], strides = [1, 1, 1]} : vector<4x10x4xf32> to vector<2x8x4xf32>
    %93 = vector.extract_strided_slice %34 {offsets = [8, 0], sizes = [1, 4], strides = [1, 1]} : vector<9x4xf32> to vector<1x4xf32>
    %94 = vector.shape_cast %93 : vector<1x4xf32> to vector<4xf32>
    %95 = vector.shape_cast %94 : vector<4xf32> to vector<1x1x4xf32>
    %96 = vector.broadcast %95 : vector<1x1x4xf32> to vector<2x8x4xf32>
    %97 = arith.mulf %92, %96 : vector<2x8x4xf32>
    %98 = arith.addf %91, %97 : vector<2x8x4xf32>
    %99 = vector.shape_cast %98 : vector<2x8x4xf32> to vector<16x4xf32>
    %c0_17 = arith.constant 0 : index
    %c0_18 = arith.constant 0 : index
    %100 = vector.load %arg7[%c0_17, %c0_18] : memref<4x8xf32, #tpu.memory_space<vmem>>, vector<4x8xf32>
    %cst_19 = arith.constant dense<0.000000e+00> : vector<16x8xf32>
    %101 = tpu.matmul %99, %100, %cst_19 {dimension_numbers = #tpu.dot_dimension_numbers<[1], [0], [0], [1], [0, 0, 1, 1], [], []>} : vector<16x4xf32>, vector<4x8xf32>, vector<16x8xf32> -> vector<16x8xf32>
    %c0_20 = arith.constant 0 : index
    %c0_21 = arith.constant 0 : index
    %102 = vector.load %arg8[%c0_20, %c0_21] : memref<1x8xf32, #tpu.memory_space<vmem>>, vector<1x8xf32>
    %103 = vector.broadcast %102 : vector<1x8xf32> to vector<16x8xf32>
    %104 = arith.addf %101, %103 : vector<16x8xf32>
    %c0_22 = arith.constant 0 : index
    %c0_23 = arith.constant 0 : index
    %c0_24 = arith.constant 0 : index
    %105 = vector.load %arg9[%c0_22, %c0_23, %c0_24] : memref<1x16x8xf32, #tpu.memory_space<vmem>>, vector<1x16x8xf32>
    %106 = vector.shape_cast %105 : vector<1x16x8xf32> to vector<16x8xf32>
    %107 = vector.shape_cast %104 : vector<16x8xf32> to vector<1x16x8xf32>
    tpu.vector_store %arg9[%c0_22, %c0_23, %c0_24], %107 {strides = array<i32>} : memref<1x16x8xf32, #tpu.memory_space<vmem>>, vector<1x16x8xf32>,
    return
  }
  func.func @transform_0(%arg0: i32, %arg1: i32) -> (i32, i32, i32) {
    %c0_i32 = arith.constant 0 : i32
    %c0_i32_0 = arith.constant 0 : i32
    return %arg0, %arg1, %c0_i32 : i32, i32, i32
  }
  func.func @transform_1(%arg0: i32, %arg1: i32) -> (i32, i32, i32, i32) {
    %c0_i32 = arith.constant 0 : i32
    %c0_i32_0 = arith.constant 0 : i32
    %c0_i32_1 = arith.constant 0 : i32
    return %arg0, %arg1, %c0_i32, %c0_i32_0 : i32, i32, i32, i32
  }
  func.func @transform_2(%arg0: i32, %arg1: i32) -> (i32, i32) {
    %c0_i32 = arith.constant 0 : i32
    %c0_i32_0 = arith.constant 0 : i32
    %c0_i32_1 = arith.constant 0 : i32
    return %c0_i32, %c0_i32_0 : i32, i32
  }
  func.func @transform_3(%arg0: i32, %arg1: i32) -> (i32, i32) {
    %c0_i32 = arith.constant 0 : i32
    %c0_i32_0 = arith.constant 0 : i32
    %c0_i32_1 = arith.constant 0 : i32
    return %c0_i32, %c0_i32_0 : i32, i32
  }
  func.func @transform_4(%arg0: i32, %arg1: i32) -> (i32, i32) {
    %c0_i32 = arith.constant 0 : i32
    %c0_i32_0 = arith.constant 0 : i32
    %c0_i32_1 = arith.constant 0 : i32
    return %c0_i32, %c0_i32_0 : i32, i32
  }
  func.func @transform_5(%arg0: i32, %arg1: i32) -> (i32, i32) {
    %c0_i32 = arith.constant 0 : i32
    %c0_i32_0 = arith.constant 0 : i32
    %c0_i32_1 = arith.constant 0 : i32
    return %c0_i32, %c0_i32_0 : i32, i32
  }
  func.func @transform_6(%arg0: i32, %arg1: i32) -> (i32, i32) {
    %c0_i32 = arith.constant 0 : i32
    %c0_i32_0 = arith.constant 0 : i32
    %c0_i32_1 = arith.constant 0 : i32
    return %c0_i32, %c0_i32_0 : i32, i32
  }
  func.func @transform_7(%arg0: i32, %arg1: i32) -> (i32, i32, i32) {
    %c0_i32 = arith.constant 0 : i32
    %c0_i32_0 = arith.constant 0 : i32
    return %arg0, %arg1, %c0_i32 : i32, i32, i32
  }
}

</mosaic_0001>

<llo_original>
// kernel: tpu_custom_call.1
$region0: #{tpu_custom_call.1}
  #allocation0 [shape = 'u32[]', space=smem, size = 0x4, offset = 0x4, fixed_abs, tag = 'smem constant byte address 0x4 - core index']
  #allocation1 [shape = 'u32[72,128]{1,0:T(1,128)}', space=vmem, size = 0x9000, scoped, tag = 'internal scratch']
  %s0 = inlined_call_operand.vmem [shape: f32[2,64,16], index: 0, kind: input, shape index: {}]
  %s1 = inlined_call_operand.vmem [shape: f32[2,4,16,16], index: 1, kind: input, shape index: {}]
  %s2 = inlined_call_operand.vmem [shape: f32[16,4], index: 2, kind: input, shape index: {}]
  %s3 = inlined_call_operand.vmem [shape: f32[1,4], index: 3, kind: input, shape index: {}]
  %s4 = inlined_call_operand.vmem [shape: f32[9,4], index: 4, kind: input, shape index: {}]
  %s5 = inlined_call_operand.vmem [shape: f32[4,8], index: 5, kind: input, shape index: {}]
  %s6 = inlined_call_operand.vmem [shape: f32[1,8], index: 6, kind: input, shape index: {}]
  %s7 = inlined_call_operand.vmem [shape: f32[2,64,8], index: 7, kind: output, shape index: {}]
  %s8 = sld [smem:[#allocation0]]
  $region61: #{tpu_custom_call.1} parent=0
    _
  %s10 = ssub.s32 1, %s8
  %s11 = scalar_select 0, %s10, %s8
  loop: start=0, step=1, limit=10
  $region2: #{tpu_custom_call.1} parent=0 // loop_pre_header
    _
  $region3: #{tpu_custom_call.1} parent=0 // loop_header
    %s13 = sphi 0, %s17
    %p14 = scmp.ge.s32.totalorder %s13, 10
    %s20 = sphi 0, %s32
    %s21 = sphi 0, %s28
    %s22 = sphi 0, %s20
    %s23 = sphi 0, %s21
    %s24 = sphi 0, %s22
    %s25 = sphi 0, %s23
    %s37 = sphi 0, %s39
    %s40 = sphi 0, %s37
    %s41 = sphi 0, %s40
    %s57 = sphi 0, %s41
    %s65 = sphi 0, %s67
    %s68 = sphi 0, %s65
    %s69 = sphi 0, %s68
    %s85 = sphi 0, %s69
    %s89 = sphi 0, %s89
    %s91 = sphi 0, %s89
    %s92 = sphi 0, %s91
    %s106 = sphi 0, %s92
    %s110 = sphi 0, %s110
    %s112 = sphi 0, %s110
    %s113 = sphi 0, %s112
    %s127 = sphi 0, %s113
    %s131 = sphi 0, %s131
    %s133 = sphi 0, %s131
    %s134 = sphi 0, %s133
    %s148 = sphi 0, %s134
    %s152 = sphi 0, %s152
    %s154 = sphi 0, %s152
    %s155 = sphi 0, %s154
    %s169 = sphi 0, %s155
    %s173 = sphi 0, %s173
    %s175 = sphi 0, %s173
    %s176 = sphi 0, %s175
    %s190 = sphi 0, %s176
    %s198 = sphi 0, %s200
    %s201 = sphi 0, %s198
    %s202 = sphi 0, %s201
    %s218 = sphi 0, %s202
  $region4: #{tpu_custom_call.1} parent=0 // loop_header_branch
    %16 = sbr.rel (%p14) target = $region8
  $region5: #{tpu_custom_call.1} parent=0 // loop_body
    %s18 = ssub.s32 %s13, 1
    %s19 = ssub.s32 %s13, 2
    %s26 = sadd.s32 1, %s21
    %p27 = scmp.ge.s32.totalorder %s26, 4
    %s28 = scalar_select %p27, 0, %s26
    %s29 = sadd.s32 1, %s20
    %s30 = scalar_select %p27, %s29, %s20
    %p31 = scmp.ge.s32.totalorder %s30, 2
    %s32 = scalar_select %p31, 0, %s30
    %s33 = ssub.s32 %s20, %s32
    %s34 = ssub.s32 %s21, %s28
    %s35 = sor.u32 %s33, %s34
    %p36 = scmp.eq.s32.totalorder %s35, 0
    %s38 = sadd.s32 %s37, 1
    %s39 = scalar_select %p36, %s37, %s38
    %p42 = pneg %p36
    %p43 = scmp.eq.s32.totalorder %s13, 7
    %p44 = por %p42, %p43
    %p45 = scmp.ne.s32.totalorder %s37, %s40
    %p46 = scmp.eq.s32.totalorder %s13, 0
    %p47 = por %p45, %p46
    %p48 = scmp.ne.s32.totalorder %s37, %s40
    %p49 = scmp.eq.s32.totalorder %s18, 7
    %p50 = por %p48, %p49
    %p51 = scmp.ne.s32.totalorder %s40, %s41
    %p52 = scmp.eq.s32.totalorder %s18, 0
    %p53 = por %p51, %p52
    %p54 = scmp.ne.s32.totalorder %s40, %s41
    %p55 = scmp.eq.s32.totalorder %s19, 7
    %p56 = por %p54, %p55
    %p58 = scmp.ne.s32.totalorder %s41, %s57
    %p59 = scmp.eq.s32.totalorder %s19, 0
    %p60 = por %p58, %p59
    %s61 = ssub.s32 %s20, %s32
    %s62 = ssub.s32 %s21, %s28
    %s63 = sor.u32 %s61, %s62
    %p64 = scmp.eq.s32.totalorder %s63, 0
    %s66 = sadd.s32 %s65, 1
    %s67 = scalar_select %p64, %s65, %s66
    %p70 = pneg %p64
    %p71 = scmp.eq.s32.totalorder %s13, 7
    %p72 = por %p70, %p71
    %p73 = scmp.ne.s32.totalorder %s65, %s68
    %p74 = scmp.eq.s32.totalorder %s13, 0
    %p75 = por %p73, %p74
    %p76 = scmp.ne.s32.totalorder %s65, %s68
    %p77 = scmp.eq.s32.totalorder %s18, 7
    %p78 = por %p76, %p77
    %p79 = scmp.ne.s32.totalorder %s68, %s69
    %p80 = scmp.eq.s32.totalorder %s18, 0
    %p81 = por %p79, %p80
    %p82 = scmp.ne.s32.totalorder %s68, %s69
    %p83 = scmp.eq.s32.totalorder %s19, 7
    %p84 = por %p82, %p83
    %p86 = scmp.ne.s32.totalorder %s69, %s85
    %p87 = scmp.eq.s32.totalorder %s19, 0
    %p88 = por %p86, %p87
    %s90 = sadd.s32 %s89, 1
    %p93 = scmp.eq.s32.totalorder %s13, 7
    %p94 = scmp.ne.s32.totalorder %s89, %s91
    %p95 = scmp.eq.s32.totalorder %s13, 0
    %p96 = por %p94, %p95
    %p97 = scmp.ne.s32.totalorder %s89, %s91
    %p98 = scmp.eq.s32.totalorder %s18, 7
    %p99 = por %p97, %p98
    %p100 = scmp.ne.s32.totalorder %s91, %s92
    %p101 = scmp.eq.s32.totalorder %s18, 0
    %p102 = por %p100, %p101
    %p103 = scmp.ne.s32.totalorder %s91, %s92
    %p104 = scmp.eq.s32.totalorder %s19, 7
    %p105 = por %p103, %p104
    %p107 = scmp.ne.s32.totalorder %s92, %s106
    %p108 = scmp.eq.s32.totalorder %s19, 0
    %p109 = por %p107, %p108
    %s111 = sadd.s32 %s110, 1
    %p114 = scmp.eq.s32.totalorder %s13, 7
    %p115 = scmp.ne.s32.totalorder %s110, %s112
    %p116 = scmp.eq.s32.totalorder %s13, 0
    %p117 = por %p115, %p116
    %p118 = scmp.ne.s32.totalorder %s110, %s112
    %p119 = scmp.eq.s32.totalorder %s18, 7
    %p120 = por %p118, %p119
    %p121 = scmp.ne.s32.totalorder %s112, %s113
    %p122 = scmp.eq.s32.totalorder %s18, 0
    %p123 = por %p121, %p122
    %p124 = scmp.ne.s32.totalorder %s112, %s113
    %p125 = scmp.eq.s32.totalorder %s19, 7
    %p126 = por %p124, %p125
    %p128 = scmp.ne.s32.totalorder %s113, %s127
    %p129 = scmp.eq.s32.totalorder %s19, 0
    %p130 = por %p128, %p129
    %s132 = sadd.s32 %s131, 1
    %p135 = scmp.eq.s32.totalorder %s13, 7
    %p136 = scmp.ne.s32.totalorder %s131, %s133
    %p137 = scmp.eq.s32.totalorder %s13, 0
    %p138 = por %p136, %p137
    %p139 = scmp.ne.s32.totalorder %s131, %s133
    %p140 = scmp.eq.s32.totalorder %s18, 7
    %p141 = por %p139, %p140
    %p142 = scmp.ne.s32.totalorder %s133, %s134
    %p143 = scmp.eq.s32.totalorder %s18, 0
    %p144 = por %p142, %p143
    %p145 = scmp.ne.s32.totalorder %s133, %s134
    %p146 = scmp.eq.s32.totalorder %s19, 7
    %p147 = por %p145, %p146
    %p149 = scmp.ne.s32.totalorder %s134, %s148
    %p150 = scmp.eq.s32.totalorder %s19, 0
    %p151 = por %p149, %p150
    %s153 = sadd.s32 %s152, 1
    %p156 = scmp.eq.s32.totalorder %s13, 7
    %p157 = scmp.ne.s32.totalorder %s152, %s154
    %p158 = scmp.eq.s32.totalorder %s13, 0
    %p159 = por %p157, %p158
    %p160 = scmp.ne.s32.totalorder %s152, %s154
    %p161 = scmp.eq.s32.totalorder %s18, 7
    %p162 = por %p160, %p161
    %p163 = scmp.ne.s32.totalorder %s154, %s155
    %p164 = scmp.eq.s32.totalorder %s18, 0
    %p165 = por %p163, %p164
    %p166 = scmp.ne.s32.totalorder %s154, %s155
    %p167 = scmp.eq.s32.totalorder %s19, 7
    %p168 = por %p166, %p167
    %p170 = scmp.ne.s32.totalorder %s155, %s169
    %p171 = scmp.eq.s32.totalorder %s19, 0
    %p172 = por %p170, %p171
    %s174 = sadd.s32 %s173, 1
    %p177 = scmp.eq.s32.totalorder %s13, 7
    %p178 = scmp.ne.s32.totalorder %s173, %s175
    %p179 = scmp.eq.s32.totalorder %s13, 0
    %p180 = por %p178, %p179
    %p181 = scmp.ne.s32.totalorder %s173, %s175
    %p182 = scmp.eq.s32.totalorder %s18, 7
    %p183 = por %p181, %p182
    %p184 = scmp.ne.s32.totalorder %s175, %s176
    %p185 = scmp.eq.s32.totalorder %s18, 0
    %p186 = por %p184, %p185
    %p187 = scmp.ne.s32.totalorder %s175, %s176
    %p188 = scmp.eq.s32.totalorder %s19, 7
    %p189 = por %p187, %p188
    %p191 = scmp.ne.s32.totalorder %s176, %s190
    %p192 = scmp.eq.s32.totalorder %s19, 0
    %p193 = por %p191, %p192
    %s194 = ssub.s32 %s20, %s32
    %s195 = ssub.s32 %s21, %s28
    %s196 = sor.u32 %s194, %s195
    %p197 = scmp.eq.s32.totalorder %s196, 0
    %s199 = sadd.s32 %s198, 1
    %s200 = scalar_select %p197, %s198, %s199
    %p203 = pneg %p197
    %p204 = scmp.eq.s32.totalorder %s13, 7
    %p205 = por %p203, %p204
    %p206 = scmp.ne.s32.totalorder %s198, %s201
    %p207 = scmp.eq.s32.totalorder %s13, 0
    %p208 = por %p206, %p207
    %p209 = scmp.ne.s32.totalorder %s198, %s201
    %p210 = scmp.eq.s32.totalorder %s18, 7
    %p211 = por %p209, %p210
    %p212 = scmp.ne.s32.totalorder %s201, %s202
    %p213 = scmp.eq.s32.totalorder %s18, 0
    %p214 = por %p212, %p213
    %p215 = scmp.ne.s32.totalorder %s201, %s202
    %p216 = scmp.eq.s32.totalorder %s19, 7
    %p217 = por %p215, %p216
    %p219 = scmp.ne.s32.totalorder %s202, %s218
    %p220 = scmp.eq.s32.totalorder %s19, 0
    %p221 = por %p219, %p220
    %p222 = scmp.le.s32.totalorder 1, %s13
    %p223 = scmp.lt.s32.totalorder %s13, 9
    %p224 = pnand %p222, %p223
    %p225 = pneg %p224
    // Predicated region
    $region9: #{tpu_custom_call.1} parent=5 // pred_check
      _
    $region10: #{tpu_custom_call.1} parent=5 // pred_check_branch
      %227 = sbr.rel (%p224) target = $region12
    $region11: #{tpu_custom_call.1} parent=5 // pred_region
      %s228 = ssub.s32 %s13, 1
      // Predicated region
      $region13: #{tpu_custom_call.1} parent=11 // pred_check
        %p229 = pneg %p102
      $region14: #{tpu_custom_call.1} parent=11 // pred_check_branch
        %231 = sbr.rel (%p229) target = $region16
      $region15: #{tpu_custom_call.1} parent=11 // pred_region
        _
      $region16: #{tpu_custom_call.1} parent=11 // pred_fallthru
        _
      // Predicated region
      $region17: #{tpu_custom_call.1} parent=11 // pred_check
        %p232 = pneg %p123
      $region18: #{tpu_custom_call.1} parent=11 // pred_check_branch
        %234 = sbr.rel (%p232) target = $region20
      $region19: #{tpu_custom_call.1} parent=11 // pred_region
        _
      $region20: #{tpu_custom_call.1} parent=11 // pred_fallthru
        _
      // Predicated region
      $region21: #{tpu_custom_call.1} parent=11 // pred_check
        %p235 = pneg %p144
      $region22: #{tpu_custom_call.1} parent=11 // pred_check_branch
        %237 = sbr.rel (%p235) target = $region24
      $region23: #{tpu_custom_call.1} parent=11 // pred_region
        _
      $region24: #{tpu_custom_call.1} parent=11 // pred_fallthru
        _
      // Predicated region
      $region25: #{tpu_custom_call.1} parent=11 // pred_check
        %p238 = pneg %p165
      $region26: #{tpu_custom_call.1} parent=11 // pred_check_branch
        %240 = sbr.rel (%p238) target = $region28
      $region27: #{tpu_custom_call.1} parent=11 // pred_region
        _
      $region28: #{tpu_custom_call.1} parent=11 // pred_fallthru
        _
      // Predicated region
      $region29: #{tpu_custom_call.1} parent=11 // pred_check
        %p241 = pneg %p186
      $region30: #{tpu_custom_call.1} parent=11 // pred_check_branch
        %243 = sbr.rel (%p241) target = $region32
      $region31: #{tpu_custom_call.1} parent=11 // pred_region
        _
      $region32: #{tpu_custom_call.1} parent=11 // pred_fallthru
        _
    $region12: #{tpu_custom_call.1} parent=5 // pred_fallthru
      _
    %p244 = scmp.lt.s32.totalorder %s13, 8
    // Predicated region
    $region33: #{tpu_custom_call.1} parent=5 // pred_check
      %p245 = pneg %p244
    $region34: #{tpu_custom_call.1} parent=5 // pred_check_branch
      %247 = sbr.rel (%p245) target = $region36
    $region35: #{tpu_custom_call.1} parent=5 // pred_region
      // Predicated region
      $region37: #{tpu_custom_call.1} parent=35 // pred_check
        %p248 = pneg %p47
      $region38: #{tpu_custom_call.1} parent=35 // pred_check_branch
        %250 = sbr.rel (%p248) target = $region40
      $region39: #{tpu_custom_call.1} parent=35 // pred_region
        %s251 = smul.u32 2, %s21
        %p252 = scmp.lt.s32.totalorder %s20, 1
        %s253 = scalar_select %p252, %s20, 1
        %p254 = scmp.lt.s32.totalorder %s251, 7
        %s255 = scalar_select %p254, %s251, 7
        %s256 = smul.addr %s253, 8
        %s257 = sadd.s32 %s255, %s256
        %s258 = smul.addr %s257, 8
        %s259 = scalar_lea.vmem %s0, %s258
        %s260 = smul.u32 2, %s21
      $region40: #{tpu_custom_call.1} parent=35 // pred_fallthru
        _
      // Predicated region
      $region41: #{tpu_custom_call.1} parent=35 // pred_check
        %p261 = pneg %p75
      $region42: #{tpu_custom_call.1} parent=35 // pred_check_branch
        %263 = sbr.rel (%p261) target = $region44
      $region43: #{tpu_custom_call.1} parent=35 // pred_region
        %p264 = scmp.lt.s32.totalorder %s20, 1
        %s265 = scalar_select %p264, %s20, 1
        %p266 = scmp.lt.s32.totalorder %s21, 3
        %s267 = scalar_select %p266, %s21, 3
        %s268 = smul.addr %s267, 2
        %s269 = smul.addr %s265, 8
        %s270 = sadd.s32 %s268, %s269
        %s271 = smul.addr %s270, 8
        %s272 = scalar_lea.vmem %s1, %s271
      $region44: #{tpu_custom_call.1} parent=35 // pred_fallthru
        _
    $region36: #{tpu_custom_call.1} parent=5 // pred_fallthru
      _
    %p273 = scmp.le.s32.totalorder 1, %s13
    %p274 = scmp.lt.s32.totalorder %s13, 9
    %p275 = pnand %p273, %p274
    %p276 = pneg %p275
    // Predicated region
    $region45: #{tpu_custom_call.1} parent=5 // pred_check
      _
    $region46: #{tpu_custom_call.1} parent=5 // pred_check_branch
      %278 = sbr.rel (%p275) target = $region48
    $region47: #{tpu_custom_call.1} parent=5 // pred_region
      %s279 = ssub.s32 %s13, 1
      %s280 = smul.u32 2, %s23
      %p281 = scmp.lt.s32.totalorder %s22, 1
      %s282 = scalar_select %p281, %s22, 1
      %p283 = scmp.lt.s32.totalorder %s280, 7
      %s284 = scalar_select %p283, %s280, 7
      %s285 = smul.addr %s282, 8
      %s286 = sadd.s32 %s284, %s285
      %s287 = smul.addr %s286, 8
      %s288 = scalar_lea.vmem %s0, %s287
      %p289 = pneg %p53
      %p290 = pneg %p50
      %p291 = scmp.lt.s32.totalorder %s22, 1
      %s292 = scalar_select %p291, %s22, 1
      %p293 = scmp.lt.s32.totalorder %s23, 3
      %s294 = scalar_select %p293, %s23, 3
      %s295 = smul.addr %s294, 2
      %s296 = smul.addr %s292, 8
      %s297 = sadd.s32 %s295, %s296
      %s298 = smul.addr %s297, 8
      %s299 = scalar_lea.vmem %s1, %s298
      %p300 = pneg %p81
      %p301 = pneg %p78
      %p302 = pneg %p102
      %p303 = pneg %p99
      %p304 = pneg %p123
      %p305 = pneg %p120
      %p306 = pneg %p144
      %p307 = pneg %p141
      %p308 = pneg %p165
      %p309 = pneg %p162
      %p310 = pneg %p186
      %p311 = pneg %p183
      %p312 = pneg %p214
      %p313 = pneg %p211
      %s314 = smul.u32 2, %s23
      %p315 = scmp.lt.s32.totalorder %s22, 1
      %s316 = scalar_select %p315, %s22, 1
      %p317 = scmp.lt.s32.totalorder %s314, 7
      %s318 = scalar_select %p317, %s314, 7
      %s319 = smul.addr %s316, 8
      %s320 = sadd.s32 %s318, %s319
      %s321 = smul.addr %s320, 8
      %s322 = scalar_lea.vmem %s7, %s321
      %s323 = smul.u32 2, %s23
      %p324 = scmp.lt.s32.totalorder %s22, 1
      %s325 = scalar_select %p324, %s22, 1
      %p326 = scmp.lt.s32.totalorder %s323, 7
      %s327 = scalar_select %p326, %s323, 7
      %s328 = smul.addr %s325, 8
      %s329 = sadd.s32 %s327, %s328
      %s330 = smul.addr %s329, 8
      %s331 = scalar_lea.vmem %s0, %s330
      %s332 = smul.u32 2, %s23
      %p333 = scmp.lt.s32.totalorder %s22, 1
      %s334 = scalar_select %p333, %s22, 1
      %p335 = scmp.lt.s32.totalorder %s23, 3
      %s336 = scalar_select %p335, %s23, 3
      %s337 = smul.addr %s336, 2
      %s338 = smul.addr %s334, 8
      %s339 = sadd.s32 %s337, %s338
      %s340 = smul.addr %s339, 8
      %s341 = scalar_lea.vmem %s1, %s340
      %s342 = smul.u32 2, %s23
      %p343 = scmp.lt.s32.totalorder %s22, 1
      %s344 = scalar_select %p343, %s22, 1
      %p345 = scmp.lt.s32.totalorder %s342, 7
      %s346 = scalar_select %p345, %s342, 7
      %s347 = smul.addr %s344, 8
      %s348 = sadd.s32 %s346, %s347
      %s349 = smul.addr %s348, 8
      %s350 = scalar_lea.vmem %s7, %s349
      %s351 = smul.u32 2, %s23
      %v352 = vld [vmem:[%s341] sm:$0xff]
      %v353 = vld [vmem:[%s341 + $0x8] sm:$0xff]
      %v354 = vld [vmem:[%s331] sm:$0xff]
      %v355 = vld [vmem:[%s331 + $0x8] sm:$0xff]
      %v356 = vld [vmem:[%s2] sm:$0xff]
      %v357 = vld [vmem:[%s2 + $0x8] sm:$0xff]
      %v358 = vld [vmem:[%s3] sm:$0x1]
      %v360 = vperm.slane %v358, 0
      %vm362 = vcmask 130048
      %v364 = vsel %vm362, %v352, 0
      %v367 = vsel %vm362, %v354, 0
      %v370 = vsel %vm362, %v355, 0
      %v373 = vsel %vm362, %v353, 0
      %375 = vmatpush.msra.mxu0 0.0
      %376 = vmatpush.msra.mxu0 0.0
      %377 = vmatpush.msra.mxu0 0.0
      %378 = vmatpush.msra.mxu0 0.0
      %379 = vmatpush.msra.mxu0 0.0
      %380 = vmatpush.msra.mxu0 0.0
      %381 = vmatpush.msra.mxu0 0.0
      %382 = vmatpush.msra.mxu0 0.0
      %383 = vmatpush.msra.mxu0 0.0
      %384 = vmatpush.msra.mxu0 0.0
      %385 = vmatpush.msra.mxu0 0.0
      %386 = vmatpush.msra.mxu0 0.0
      %387 = vmatpush.msra.mxu0 0.0
      %388 = vmatpush.msra.mxu0 0.0
      %389 = vmatpush.msra.mxu0 %v357
      %390 = vmatpush.msra.mxu0 %v356
      %391 = vmatmul.f32.gmra.mxu0 %v364
      %v392 = vpop.f32.mrf.mxu0
      %v393 = vadd.f32 %v360, %v392
      %394 = vmatmul.f32.gmra.mxu0 %v367
      %v395 = vpop.f32.mrf.mxu0
      %v396 = vadd.f32 %v360, %v395
      %397 = vmatmul.f32.gmra.mxu0 %v370
      %v398 = vpop.f32.mrf.mxu0
      %v399 = vadd.f32 %v360, %v398
      %400 = vmatmul.f32.gmra.mxu0 %v373
      %v401 = vpop.f32.mrf.mxu0
      %v402 = vadd.f32 %v360, %v401
      %403 = vdwg.mxu0
      %vm404 = vcmp.ge.f32.partialorder %v393, 0.0
      %vm405 = vcmp.ge.f32.partialorder %v396, 0.0
      %vm406 = vcmp.ge.f32.partialorder %v399, 0.0
      %vm407 = vcmp.ge.f32.partialorder %v402, 0.0
      %v408 = vmul.f32 %v393, 0.01
      %v409 = vmul.f32 %v396, 0.01
      %v410 = vmul.f32 %v399, 0.01
      %v411 = vmul.f32 %v402, 0.01
      %v412 = vsel %vm404, %v393, %v408
      %v413 = vsel %vm405, %v396, %v409
      %v414 = vsel %vm406, %v399, %v410
      %v415 = vsel %vm407, %v402, %v411
      %v416 = vlaneseq
      %v417 = vshrl.u32 %v416, 7
      %v418 = vadd.s32 %v417, 8
      %v419 = vadd.s32 %v417, 16
      %v420 = vadd.s32 %v417, 24
      %vm421 = vcmp.lt.s32.totalorder %v417, 8
      %vm422 = vcmp.lt.s32.totalorder %v418, 8
      %vm423 = vcmp.lt.s32.totalorder %v419, 8
      %vm424 = vcmp.lt.s32.totalorder %v420, 8
      %p425 = scmp.eq.s32.totalorder %s23, 0
      %s426 = scalar_select %p425, 1, 0
      %v427 = vstv %s426
      %vm428 = vcmp.eq.s32.totalorder %v427, 1
      %vm429 = vmand %vm421, %vm428
      %vm430 = vmand %vm422, %vm428
      %vm431 = vmand %vm423, %vm428
      %vm432 = vmand %vm424, %vm428
      %vm433 = vcmp.ge.s32.totalorder %v417, 24
      %vm434 = vcmp.ge.s32.totalorder %v418, 24
      %vm435 = vcmp.ge.s32.totalorder %v419, 24
      %vm436 = vcmp.ge.s32.totalorder %v420, 24
      %p437 = scmp.eq.s32.totalorder %s23, 3
      %s438 = scalar_select %p437, 1, 0
      %v439 = vstv %s438
      %vm440 = vcmp.eq.s32.totalorder %v439, 1
      %vm441 = vmand %vm433, %vm440
      %vm442 = vmand %vm434, %vm440
      %vm443 = vmand %vm435, %vm440
      %vm444 = vmand %vm436, %vm440
      %vm445 = vmor %vm429, %vm441
      %vm446 = vmor %vm430, %vm442
      %vm447 = vmor %vm431, %vm443
      %vm448 = vmor %vm432, %vm444
      %v449 = vsel %vm445, 0.0, %v412
      %v450 = vsel %vm446, 0.0, %v413
      %v451 = vsel %vm447, 0.0, %v414
      %v452 = vsel %vm448, 0.0, %v415
      %v457 = vrot.slane %v449, 7
      %v458 = vrot.slane %v450, 7
      %v459 = vrot.slane %v451, 7
      %v460 = vrot.slane %v452, 7
      %vm465 = vcmask 1040384
      %v466 = vsel %vm465, 0.0, %v457
      %v467 = vsel %vm465, 0.0, %v458
      %v468 = vsel %vm465, 0.0, %v459
      %v469 = vsel %vm465, 0.0, %v460
      %v470 = vsel %vm465, %v457, 0.0
      %v471 = vsel %vm465, %v458, 0.0
      %v472 = vsel %vm465, %v459, 0.0
      %v473 = vsel %vm465, %v460, 0.0
      %v474 = vld [vmem:[%s4] sm:$0xff]
      %v475 = vld [vmem:[%s4 + $0x8] sm:$0x1]
      %v476 = vperm.slane %v474, 0
      %v477 = vmul.f32 %v466, %v476
      %v478 = vmul.f32 %v467, %v476
      %v479 = vadd.f32 %v477, 0.0
      %v480 = vadd.f32 %v478, 0.0
      %v481 = vperm.slane %v474, 1
      %v482 = vmul.f32 %v466, %v481
      %v483 = vmul.f32 %v470, %v481
      %v484 = vmul.f32 %v467, %v481
      %v485 = vmul.f32 %v471, %v481
      %vm490 = vcmask 1046528
      %v491 = vrot.slane %v482, 1
      %v492 = vrot.slane %v483, 1
      %v493 = vsel %vm490, %v491, %v492
      %v494 = vrot.slane %v484, 1
      %v495 = vrot.slane %v485, 1
      %v496 = vsel %vm490, %v494, %v495
      %v499 = vadd.f32 %v479, %v493
      %v500 = vadd.f32 %v480, %v496
      %v501 = vperm.slane %v474, 2
      %v502 = vmul.f32 %v466, %v501
      %v503 = vmul.f32 %v470, %v501
      %v504 = vmul.f32 %v467, %v501
      %v505 = vmul.f32 %v471, %v501
      %vm510 = vcmask 1045504
      %v511 = vrot.slane %v502, 2
      %v512 = vrot.slane %v503, 2
      %v513 = vsel %vm510, %v511, %v512
      %v514 = vrot.slane %v504, 2
      %v515 = vrot.slane %v505, 2
      %v516 = vsel %vm510, %v514, %v515
      %v519 = vadd.f32 %v499, %v513
      %v520 = vadd.f32 %v500, %v516
      %v521 = vperm.slane %v474, 3
      %v522 = vmul.f32 %v467, %v521
      %v523 = vmul.f32 %v468, %v521
      %v524 = vadd.f32 %v519, %v522
      %v525 = vadd.f32 %v520, %v523
      %v526 = vperm.slane %v474, 4
      %v527 = vmul.f32 %v467, %v526
      %v528 = vmul.f32 %v471, %v526
      %v529 = vmul.f32 %v468, %v526
      %v530 = vmul.f32 %v472, %v526
      %v535 = vrot.slane %v527, 1
      %v536 = vrot.slane %v528, 1
      %v537 = vsel %vm490, %v535, %v536
      %v538 = vrot.slane %v529, 1
      %v539 = vrot.slane %v530, 1
      %v540 = vsel %vm490, %v538, %v539
      %v543 = vadd.f32 %v524, %v537
      %v544 = vadd.f32 %v525, %v540
      %v545 = vperm.slane %v474, 5
      %v546 = vmul.f32 %v467, %v545
      %v547 = vmul.f32 %v471, %v545
      %v548 = vmul.f32 %v468, %v545
      %v549 = vmul.f32 %v472, %v545
      %v554 = vrot.slane %v546, 2
      %v555 = vrot.slane %v547, 2
      %v556 = vsel %vm510, %v554, %v555
      %v557 = vrot.slane %v548, 2
      %v558 = vrot.slane %v549, 2
      %v559 = vsel %vm510, %v557, %v558
      %v562 = vadd.f32 %v543, %v556
      %v563 = vadd.f32 %v544, %v559
      %v564 = vperm.slane %v474, 6
      %v565 = vmul.f32 %v468, %v564
      %v566 = vmul.f32 %v469, %v564
      %v567 = vadd.f32 %v562, %v565
      %v568 = vadd.f32 %v563, %v566
      %v569 = vperm.slane %v474, 7
      %v570 = vmul.f32 %v468, %v569
      %v571 = vmul.f32 %v472, %v569
      %v572 = vmul.f32 %v469, %v569
      %v573 = vmul.f32 %v473, %v569
      %v578 = vrot.slane %v570, 1
      %v579 = vrot.slane %v571, 1
      %v580 = vsel %vm490, %v578, %v579
      %v581 = vrot.slane %v572, 1
      %v582 = vrot.slane %v573, 1
      %v583 = vsel %vm490, %v581, %v582
      %v586 = vadd.f32 %v567, %v580
      %v587 = vadd.f32 %v568, %v583
      %v588 = vperm.slane %v475, 0
      %v589 = vmul.f32 %v468, %v588
      %v590 = vmul.f32 %v472, %v588
      %v591 = vmul.f32 %v469, %v588
      %v592 = vmul.f32 %v473, %v588
      %v597 = vrot.slane %v589, 2
      %v598 = vrot.slane %v590, 2
      %v599 = vsel %vm510, %v597, %v598
      %v600 = vrot.slane %v591, 2
      %v601 = vrot.slane %v592, 2
      %v602 = vsel %vm510, %v600, %v601
      %v605 = vadd.f32 %v586, %v599
      %v606 = vadd.f32 %v587, %v602
      %v607 = vld [vmem:[%s5] sm:$0xf]
      %v608 = vld [vmem:[%s6] sm:$0x1]
      %v610 = vperm.slane %v608, 0
      %vm612 = vcmask 31744
      %v614 = vsel %vm612, %v605, 0
      %v617 = vsel %vm612, %v606, 0
      %vm619 = vcmask 1043456
      %v621 = vsel %vm619, %v607, 0
      %623 = vmatpush.msra.mxu0 0.0
      %624 = vmatpush.msra.mxu0 0.0
      %625 = vmatpush.msra.mxu0 0.0
      %626 = vmatpush.msra.mxu0 0.0
      %627 = vmatpush.msra.mxu0 0.0
      %628 = vmatpush.msra.mxu0 0.0
      %629 = vmatpush.msra.mxu0 0.0
      %630 = vmatpush.msra.mxu0 0.0
      %631 = vmatpush.msra.mxu0 0.0
      %632 = vmatpush.msra.mxu0 0.0
      %633 = vmatpush.msra.mxu0 0.0
      %634 = vmatpush.msra.mxu0 0.0
      %635 = vmatpush.msra.mxu0 0.0
      %636 = vmatpush.msra.mxu0 0.0
      %637 = vmatpush.msra.mxu0 0.0
      %638 = vmatpush.msra.mxu0 %v621
      %639 = vmatmul.f32.gmra.mxu0 %v614
      %v640 = vpop.f32.mrf.mxu0
      %v641 = vadd.f32 %v610, %v640
      %642 = vmatmul.f32.gmra.mxu0 %v617
      %v643 = vpop.f32.mrf.mxu0
      %v644 = vadd.f32 %v610, %v643
      %645 = vdwg.mxu0
      %vm646 = vcmask 64512
      %647 = vst.msk [vmem:[%s350] sm:$0xff] %vm646, %v641
      %648 = vst.msk [vmem:[%s350 + $0x8] sm:$0xff] %vm646, %v644
      %s649 = smul.u32 2, %s23
      %p650 = scmp.lt.s32.totalorder %s22, 1
      %s651 = scalar_select %p650, %s22, 1
      %p652 = scmp.lt.s32.totalorder %s649, 7
      %s653 = scalar_select %p652, %s649, 7
      %s654 = smul.addr %s651, 8
      %s655 = sadd.s32 %s653, %s654
      %s656 = smul.addr %s655, 8
      %s657 = scalar_lea.vmem %s7, %s656
      // Predicated region
      $region49: #{tpu_custom_call.1} parent=47 // pred_check
        %p658 = pneg %p211
      $region50: #{tpu_custom_call.1} parent=47 // pred_check_branch
        %660 = sbr.rel (%p658) target = $region52
      $region51: #{tpu_custom_call.1} parent=47 // pred_region
        %s661 = smul.u32 2, %s23
      $region52: #{tpu_custom_call.1} parent=47 // pred_fallthru
        _
    $region48: #{tpu_custom_call.1} parent=5 // pred_fallthru
      _
    %p662 = scmp.le.s32.totalorder 2, %s13
    // Predicated region
    $region53: #{tpu_custom_call.1} parent=5 // pred_check
      %p663 = pneg %p662
    $region54: #{tpu_custom_call.1} parent=5 // pred_check_branch
      %665 = sbr.rel (%p663) target = $region56
    $region55: #{tpu_custom_call.1} parent=5 // pred_region
      %s666 = ssub.s32 %s13, 2
      // Predicated region
      $region57: #{tpu_custom_call.1} parent=55 // pred_check
        %p667 = pneg %p217
      $region58: #{tpu_custom_call.1} parent=55 // pred_check_branch
        %669 = sbr.rel (%p667) target = $region60
      $region59: #{tpu_custom_call.1} parent=55 // pred_region
        %s670 = smul.u32 2, %s25
        %p671 = scmp.lt.s32.totalorder %s24, 1
        %s672 = scalar_select %p671, %s24, 1
        %p673 = scmp.lt.s32.totalorder %s670, 7
        %s674 = scalar_select %p673, %s670, 7
        %s675 = smul.addr %s672, 8
        %s676 = sadd.s32 %s674, %s675
        %s677 = smul.addr %s676, 8
        %s678 = scalar_lea.vmem %s7, %s677
      $region60: #{tpu_custom_call.1} parent=55 // pred_fallthru
        _
    $region56: #{tpu_custom_call.1} parent=5 // pred_fallthru
      _
  $region6: #{tpu_custom_call.1} parent=0 // loop_footer
    %s17 = sadd.s32 1, %s13
  $region7: #{tpu_custom_call.1} parent=0 // loop_footer_branch
    %12 = sbr.rel target = $region3
  $region8: #{tpu_custom_call.1} parent=0 // loop_exit
    _

</llo_original>
